<compile_context>
chip_gen: v5e
topology: v5e:2x2
jax: 0.10.0
libtpu: 0.0.40
codegen_flags: <defaults>
</compile_context>

<pallas_src>
import jax
import jax.numpy as jnp
from jax.experimental import pallas as pl
from jax.experimental.pallas import tpu as pltpu


def _round_up(a, b):
    return (a + b - 1) // b * b


def _ia3_linear_kernel(x_ref, w_ref, sb_ref, o_ref, acc_ref):
    k = pl.program_id(2)

    @pl.when(k == 0)
    def _():
        acc_ref[...] = jnp.zeros_like(acc_ref)

    # (tm, tk) x (tn, tk)^T -> (tm, tn); f32 accumulation on the MXU.
    acc_ref[...] += jax.lax.dot_general(
        x_ref[...], w_ref[...],
        dimension_numbers=(((1,), (1,)), ((), ())),
        preferred_element_type=jnp.float32)

    @pl.when(k == pl.num_programs(2) - 1)
    def _():
        scale = sb_ref[0:1, :]      # mixed IA3 vector          (1, tn)
        bias_s = sb_ref[1:2, :]     # bias * mixed IA3 vector   (1, tn)
        o_ref[...] = (acc_ref[...] * scale + bias_s).astype(o_ref.dtype)


def ia3_linear_forward(x, weight, bias, task_mixing_weights, ia3_vector,
                       temperature, *, tm=256, tn=256, compute_dtype=None,
                       vmem_budget_bytes=40 * 1024 * 1024):
    """x: (B, S, K); weight: (N, K) torch layout; bias: (N,);
    task_mixing_weights: (V,); ia3_vector: (V, N).

    compute_dtype: cast x / weight (e.g. jnp.bfloat16 on v6e/v7x); f32 accum.
    """
    B, S, K = x.shape
    N, K_w = weight.shape
    assert K_w == K
    M = B * S
    out_dtype = x.dtype

    # ---- grid-invariant IA3 mixing (O(V*N)) hoisted out of the kernel ------
    mix = jax.nn.softmax(
        task_mixing_weights.astype(jnp.float32) / float(temperature), axis=-1)
    mixed_ia3 = jnp.sum(mix[:, None] * ia3_vector.astype(jnp.float32), axis=0)
    bias_f32 = bias.astype(jnp.float32)
    scale_bias = jnp.stack([mixed_ia3, bias_f32 * mixed_ia3], axis=0)  # (2, N)

    if compute_dtype is not None:
        # TODO(synk): cache the casted weight across calls instead of per-call.
        x = x.astype(compute_dtype)
        weight = weight.astype(compute_dtype)

    x2 = x.reshape(M, K)
    in_b = jnp.dtype(x2.dtype).itemsize
    out_b = jnp.dtype(out_dtype).itemsize

    # ---- tile selection -----------------------------------------------------
    tm = _round_up(max(tm, 8), 8)
    tn = _round_up(max(tn, 128), 128)
    tm_eff = M if M <= tm else tm          # full-dim block is always legal

    def footprint(tm_, tn_, tk_):
        return (2 * tm_ * tk_ * in_b            # x, double-buffered
                + 2 * tn_ * tk_ * in_b          # weight, double-buffered
                + 2 * tm_ * tn_ * out_b         # output, double-buffered
                + tm_ * tn_ * 4                 # f32 accumulator scratch
                + 2 * 2 * max(tn_, 128) * 4)    # (2, tn) scale/bias

    if footprint(tm_eff, N, K) <= vmem_budget_bytes:
        # VMEM-resident weight: block index constant across all M tiles ->
        # weight streamed from HBM exactly once.
        tn_eff, tk_eff = N, K
    else:
        tn_eff = N if N <= tn else tn
        tk_eff = K
        if footprint(tm_eff, tn_eff, K) > vmem_budget_bytes and K > 128:
            # K-tiled path: bound VMEM independent of K.
            fixed = footprint(tm_eff, tn_eff, 0)
            per_k = 2 * (tm_eff + tn_eff) * in_b
            tk_max = max(128, ((vmem_budget_bytes - fixed) // per_k // 128) * 128)
            t = min(tk_max, (K // 128) * 128)
            tk_eff = 0
            while t >= 128:
                if K % t == 0:                  # divisor -> no garbage in the
                    tk_eff = t                  # contraction, no padding needed
                    break
                t -= 128
            if tk_eff == 0:
                # No multiple-of-128 divisor fits: zero-pad K (zeros are safe).
                # TODO(synk): cache the zero-padded weight across calls.
                tk_eff = tk_max
                k_pad = _round_up(K, tk_eff)
                x2 = jnp.pad(x2, ((0, 0), (0, k_pad - K)))
                weight = jnp.pad(weight, ((0, 0), (0, k_pad - K)))
                K = k_pad

    grid = (pl.cdiv(N, tn_eff), pl.cdiv(M, tm_eff), pl.cdiv(K, tk_eff))

    fp = footprint(tm_eff, tn_eff, tk_eff)
    vmem_limit = int(min(max(fp + fp // 2, 16 * 1024 * 1024), 48 * 1024 * 1024))

    out = pl.pallas_call(
        _ia3_linear_kernel,
        out_shape=jax.ShapeDtypeStruct((M, N), out_dtype),
        grid_spec=pltpu.PrefetchScalarGridSpec(
            num_scalar_prefetch=0,
            grid=grid,
            in_specs=[
                pl.BlockSpec((tm_eff, tk_eff), lambda j, i, k: (i, k)),  # x
                pl.BlockSpec((tn_eff, tk_eff), lambda j, i, k: (j, k)),  # W (N,K)
                pl.BlockSpec((2, tn_eff), lambda j, i, k: (0, j)),       # [scale; b*scale]
            ],
            out_specs=pl.BlockSpec((tm_eff, tn_eff), lambda j, i, k: (i, j)),
            scratch_shapes=[pltpu.VMEM((tm_eff, tn_eff), jnp.float32)],
        ),
        compiler_params=pltpu.CompilerParams(
            dimension_semantics=("parallel", "parallel", "arbitrary"),
            vmem_limit_bytes=vmem_limit),
    )(x2, weight, scale_bias)

    return out.reshape(B, S, N)


def ia3_linear_reference(x, weight, bias, task_mixing_weights, ia3_vector,
                         temperature):
    hidden = jnp.einsum('bsk,nk->bsn', x, weight,
                        precision=jax.lax.Precision.HIGHEST) + bias
    mix = jax.nn.softmax(task_mixing_weights / temperature, axis=-1)
    mixed = jnp.sum(mix[:, None] * ia3_vector, axis=0)
    return hidden * mixed


if __name__ == "__main__":
    batch, seq, in_features, out_features, num_vectors = 2, 8, 32, 64, 4
    temperature = 0.7

    key = jax.random.PRNGKey(0)
    kx, kw, kb, kt, ki = jax.random.split(key, 5)

    x = jax.random.normal(kx, (batch, seq, in_features), dtype=jnp.float32)
    weight = jax.random.normal(kw, (out_features, in_features),
                               dtype=jnp.float32) * 0.1
    bias = jax.random.normal(kb, (out_features,), dtype=jnp.float32) * 0.1
    task_mixing_weights = jax.random.normal(kt, (num_vectors,),
                                            dtype=jnp.float32)
    ia3_vector = jnp.ones((num_vectors, out_features), dtype=jnp.float32) \
        + 0.05 * jax.random.normal(ki, (num_vectors, out_features),
                                   dtype=jnp.float32)

    # 1) f32, weight-resident path.
    out = jax.block_until_ready(ia3_linear_forward(
        x, weight, bias, task_mixing_weights, ia3_vector, temperature))
    ref = ia3_linear_reference(x, weight, bias, task_mixing_weights,
                               ia3_vector, temperature)
    assert out.shape == (batch, seq, out_features)
    assert jnp.allclose(out, ref, atol=1e-5, rtol=1e-5), \
        f"max err {jnp.max(jnp.abs(out - ref))}"

    # 2) Ragged M (B*S = 33): no activation padding, full-dim M block.
    x2 = jax.random.normal(kx, (3, 11, in_features), dtype=jnp.float32)
    out2 = jax.block_until_ready(ia3_linear_forward(
        x2, weight, bias, task_mixing_weights, ia3_vector, temperature))
    ref2 = ia3_linear_reference(x2, weight, bias, task_mixing_weights,
                                ia3_vector, temperature)
    assert out2.shape == ref2.shape
    assert jnp.allclose(out2, ref2, atol=1e-5, rtol=1e-5), \
        f"max err {jnp.max(jnp.abs(out2 - ref2))}"

    # 3) K-tiled accumulator path (tiny VMEM budget forces tk=128, 4 K-steps).
    M3, K3, N3 = 128, 512, 256
    kx3, kw3, kb3, ki3 = jax.random.split(jax.random.PRNGKey(1), 4)
    x3 = jax.random.normal(kx3, (2, M3 // 2, K3), dtype=jnp.float32)
    w3 = jax.random.normal(kw3, (N3, K3), dtype=jnp.float32) * 0.05
    b3 = jax.random.normal(kb3, (N3,), dtype=jnp.float32) * 0.1
    ia3_3 = jnp.ones((num_vectors, N3), dtype=jnp.float32) \
        + 0.05 * jax.random.normal(ki3, (num_vectors, N3), dtype=jnp.float32)
    out3 = jax.block_until_ready(ia3_linear_forward(
        x3, w3, b3, task_mixing_weights, ia3_3, temperature,
        vmem_budget_bytes=1 * 1024 * 1024))
    ref3 = ia3_linear_reference(x3, w3, b3, task_mixing_weights, ia3_3,
                                temperature)
    assert jnp.allclose(out3, ref3, atol=1e-4, rtol=1e-4), \
        f"max err {jnp.max(jnp.abs(out3 - ref3))}"

    # 4) bf16 compute path (recommended on v6e / v7x), f32 accumulation.
    out4 = jax.block_until_ready(ia3_linear_forward(
        x, weight, bias, task_mixing_weights, ia3_vector, temperature,
        compute_dtype=jnp.bfloat16))
    assert jnp.allclose(out4, ref, atol=5e-2, rtol=5e-2), \
        f"max err {jnp.max(jnp.abs(out4 - ref))}"

    print("KERNEL_OK")
</pallas_src>

<mosaic_0001>
module attributes {stable_mosaic.version = 11 : i64} {
  func.func @_ia3_linear_kernel(%arg0: i32, %arg1: i32, %arg2: i32, %arg3: memref<16x32xf32, #tpu.memory_space<vmem>>, %arg4: memref<64x32xf32, #tpu.memory_space<vmem>>, %arg5: memref<2x64xf32, #tpu.memory_space<vmem>>, %arg6: memref<16x64xf32, #tpu.memory_space<vmem>>, %arg7: memref<16x64xf32, #tpu.memory_space<vmem>>) attributes {dimension_semantics = [#tpu.dimension_semantics<parallel>, #tpu.dimension_semantics<parallel>, #tpu.dimension_semantics<arbitrary>], iteration_bounds = array<i64: 1, 1, 1>, scalar_prefetch = 0 : i64, scratch_operands = 1 : i64, tpu.core_type = #tpu.core_type<tc>, window_params = [{transform_indices = @transform_0, window_bounds = array<i64: 16, 32>}, {transform_indices = @transform_1, window_bounds = array<i64: 64, 32>}, {transform_indices = @transform_2, window_bounds = array<i64: 2, 64>}, {transform_indices = @transform_3, window_bounds = array<i64: 16, 64>}]} {
    %c0_i32 = arith.constant 0 : i32
    %0 = arith.cmpi eq, %arg2, %c0_i32 : i32
    %1 = arith.extui %0 : i1 to i32
    %c0_i32_0 = arith.constant 0 : i32
    %2 = arith.cmpi ne, %1, %c0_i32_0 : i32
    scf.if %2 {
      %cst_10 = arith.constant 0.000000e+00 : f32
      %12 = vector.broadcast %cst_10 : f32 to vector<16x64xf32>
      %c0_11 = arith.constant 0 : index
      %c0_12 = arith.constant 0 : index
      %13 = vector.load %arg7[%c0_11, %c0_12] : memref<16x64xf32, #tpu.memory_space<vmem>>, vector<16x64xf32>
      tpu.vector_store %arg7[%c0_11, %c0_12], %12 {strides = array<i32>} : memref<16x64xf32, #tpu.memory_space<vmem>>, vector<16x64xf32>,
    } else {
    }
    %c0 = arith.constant 0 : index
    %c0_1 = arith.constant 0 : index
    %3 = vector.load %arg7[%c0, %c0_1] : memref<16x64xf32, #tpu.memory_space<vmem>>, vector<16x64xf32>
    %c0_2 = arith.constant 0 : index
    %c0_3 = arith.constant 0 : index
    %4 = vector.load %arg3[%c0_2, %c0_3] : memref<16x32xf32, #tpu.memory_space<vmem>>, vector<16x32xf32>
    %c0_4 = arith.constant 0 : index
    %c0_5 = arith.constant 0 : index
    %5 = vector.load %arg4[%c0_4, %c0_5] : memref<64x32xf32, #tpu.memory_space<vmem>>, vector<64x32xf32>
    %cst = arith.constant dense<0.000000e+00> : vector<16x64xf32>
    %6 = tpu.matmul %4, %5, %cst {dimension_numbers = #tpu.dot_dimension_numbers<[1], [1], [0], [0], [0, 0, 1, 0], [], []>} : vector<16x32xf32>, vector<64x32xf32>, vector<16x64xf32> -> vector<16x64xf32>
    %7 = arith.addf %3, %6 : vector<16x64xf32>
    %c0_6 = arith.constant 0 : index
    %c0_7 = arith.constant 0 : index
    %8 = vector.load %arg7[%c0_6, %c0_7] : memref<16x64xf32, #tpu.memory_space<vmem>>, vector<16x64xf32>
    tpu.vector_store %arg7[%c0_6, %c0_7], %7 {strides = array<i32>} : memref<16x64xf32, #tpu.memory_space<vmem>>, vector<16x64xf32>,
    %c0_i32_8 = arith.constant 0 : i32
    %9 = arith.cmpi eq, %arg2, %c0_i32_8 : i32
    %10 = arith.extui %9 : i1 to i32
    %c0_i32_9 = arith.constant 0 : i32
    %11 = arith.cmpi ne, %10, %c0_i32_9 : i32
    scf.if %11 {
      %c0_10 = arith.constant 0 : index
      %c0_11 = arith.constant 0 : index
      %12 = vector.load %arg5[%c0_10, %c0_11] : memref<2x64xf32, #tpu.memory_space<vmem>>, vector<1x64xf32>
      %c1 = arith.constant 1 : index
      %c0_12 = arith.constant 0 : index
      %13 = vector.load %arg5[%c1, %c0_12] : memref<2x64xf32, #tpu.memory_space<vmem>>, vector<1x64xf32>
      %c0_13 = arith.constant 0 : index
      %c0_14 = arith.constant 0 : index
      %14 = vector.load %arg7[%c0_13, %c0_14] : memref<16x64xf32, #tpu.memory_space<vmem>>, vector<16x64xf32>
      %15 = vector.broadcast %12 : vector<1x64xf32> to vector<16x64xf32>
      %16 = arith.mulf %14, %15 : vector<16x64xf32>
      %17 = vector.broadcast %13 : vector<1x64xf32> to vector<16x64xf32>
      %18 = arith.addf %16, %17 : vector<16x64xf32>
      %c0_15 = arith.constant 0 : index
      %c0_16 = arith.constant 0 : index
      %19 = vector.load %arg6[%c0_15, %c0_16] : memref<16x64xf32, #tpu.memory_space<vmem>>, vector<16x64xf32>
      tpu.vector_store %arg6[%c0_15, %c0_16], %18 {strides = array<i32>} : memref<16x64xf32, #tpu.memory_space<vmem>>, vector<16x64xf32>,
    } else {
    }
    return
  }
  func.func @transform_0(%arg0: i32, %arg1: i32, %arg2: i32) -> (i32, i32) {
    %c0_i32 = arith.constant 0 : i32
    return %arg1, %arg2 : i32, i32
  }
  func.func @transform_1(%arg0: i32, %arg1: i32, %arg2: i32) -> (i32, i32) {
    %c0_i32 = arith.constant 0 : i32
    return %arg0, %arg2 : i32, i32
  }
  func.func @transform_2(%arg0: i32, %arg1: i32, %arg2: i32) -> (i32, i32) {
    %c0_i32 = arith.constant 0 : i32
    %c0_i32_0 = arith.constant 0 : i32
    return %c0_i32, %arg0 : i32, i32
  }
  func.func @transform_3(%arg0: i32, %arg1: i32, %arg2: i32) -> (i32, i32) {
    %c0_i32 = arith.constant 0 : i32
    return %arg1, %arg0 : i32, i32
  }
}

</mosaic_0001>

<llo_original>
// kernel: tpu_custom_call.1
$region0: #{tpu_custom_call.1}
  #allocation0 [shape = 'u32[]', space=smem, size = 0x4, offset = 0x4, fixed_abs, tag = 'smem constant byte address 0x4 - core index']
  #allocation1 [shape = 'u32[72,128]{1,0:T(1,128)}', space=vmem, size = 0x9000, scoped, tag = 'internal scratch']
  #allocation2 [shape = 'f32[16,64]{1,0:T(8,128)}', space=vmem, size = 0x2000, scoped, tag = 'scratch operand']
  %s0 = inlined_call_operand.vmem [shape: f32[16,32], index: 0, kind: input, shape index: {}]
  %s1 = inlined_call_operand.vmem [shape: f32[64,32], index: 1, kind: input, shape index: {}]
  %s2 = inlined_call_operand.vmem [shape: f32[2,64], index: 2, kind: input, shape index: {}]
  %s3 = inlined_call_operand.hbm [shape: f32[16,64], index: 3, kind: output, shape index: {}]
  %s4 = sld [smem:[#allocation0]]
  $region30: #{tpu_custom_call.1} parent=0
    _
  %s6 = ssub.s32 1, %s4
  %s7 = scalar_select 0, %s6, %s4
  $region1: #{tpu_custom_call.1} parent=0
    #allocation3 [shape = 'u8[8192]{0}', space=vmem, size = 0x2000, scoped, tag = 'output window, operand 0, single buffered']
    #allocation4 [shape = 's32[1]{0}', space=sflag, size = 0x4, scoped, tag = 'scoped memory for tpu_custom_call.1']
    %8 = vsyncpa [#allocation4], 0
    // Predicated region
    $region2: #{tpu_custom_call.1} parent=1 // pred_check
      _
    $region3: #{tpu_custom_call.1} parent=1 // pred_check_branch
      %10 = sbr.rel (0) target = $region5
    $region4: #{tpu_custom_call.1} parent=1 // pred_region
      _
    $region5: #{tpu_custom_call.1} parent=1 // pred_fallthru
      _
    // Predicated region
    $region6: #{tpu_custom_call.1} parent=1 // pred_check
      _
    $region7: #{tpu_custom_call.1} parent=1 // pred_check_branch
      %12 = sbr.rel (0) target = $region9
    $region8: #{tpu_custom_call.1} parent=1 // pred_region
      _
    $region9: #{tpu_custom_call.1} parent=1 // pred_fallthru
      _
    // Predicated region
    $region10: #{tpu_custom_call.1} parent=1 // pred_check
      _
    $region11: #{tpu_custom_call.1} parent=1 // pred_check_branch
      %14 = sbr.rel (0) target = $region13
    $region12: #{tpu_custom_call.1} parent=1 // pred_region
      _
    $region13: #{tpu_custom_call.1} parent=1 // pred_fallthru
      _
    %p15 = scmp.eq.s32.totalorder 0, 0
    // Predicated region
    $region14: #{tpu_custom_call.1} parent=1 // pred_check
      %p16 = pneg %p15
    $region15: #{tpu_custom_call.1} parent=1 // pred_check_branch
      %18 = sbr.rel (%p16) target = $region17
    $region16: #{tpu_custom_call.1} parent=1 // pred_region
      %vm19 = vcmask 523264
      %20 = vst.msk [vmem:[#allocation2] sm:$0xff] %vm19, 0.0
      %21 = vst.msk [vmem:[#allocation2 + $0x8] sm:$0xff] %vm19, 0.0
    $region17: #{tpu_custom_call.1} parent=1 // pred_fallthru
      _
    %v22 = vld [vmem:[#allocation2] sm:$0xff]
    %v23 = vld [vmem:[#allocation2 + $0x8] sm:$0xff]
    %v24 = vld [vmem:[%s0] sm:$0xff]
    %v25 = vld [vmem:[%s0 + $0x8] sm:$0xff]
    %v26 = vld [vmem:[%s1] sm:$0xff]
    %v27 = vld [vmem:[%s1 + $0x8] sm:$0xff]
    %v28 = vld [vmem:[%s1 + $0x10] sm:$0xff]
    %v29 = vld [vmem:[%s1 + $0x18] sm:$0xff]
    %v30 = vld [vmem:[%s1 + $0x20] sm:$0xff]
    %v31 = vld [vmem:[%s1 + $0x28] sm:$0xff]
    %v32 = vld [vmem:[%s1 + $0x30] sm:$0xff]
    %v33 = vld [vmem:[%s1 + $0x38] sm:$0xff]
    %vm34 = vcmask 261120
    %v36 = vsel %vm34, %v24, 0
    %v39 = vsel %vm34, %v25, 0
    %v42 = vsel %vm34, %v26, 0
    %v45 = vsel %vm34, %v27, 0
    %v48 = vsel %vm34, %v28, 0
    %v51 = vsel %vm34, %v29, 0
    %v54 = vsel %vm34, %v30, 0
    %v57 = vsel %vm34, %v31, 0
    %v60 = vsel %vm34, %v32, 0
    %v63 = vsel %vm34, %v33, 0
    %65 = vmatpush.xpose.msra.mxu0 0.0
    %66 = vmatpush.xpose.msra.mxu0 0.0
    %67 = vmatpush.xpose.msra.mxu0 0.0
    %68 = vmatpush.xpose.msra.mxu0 0.0
    %69 = vmatpush.xpose.msra.mxu0 0.0
    %70 = vmatpush.xpose.msra.mxu0 0.0
    %71 = vmatpush.xpose.msra.mxu0 0.0
    %72 = vmatpush.xpose.msra.mxu0 0.0
    %73 = vmatpush.xpose.msra.mxu0 %v63
    %74 = vmatpush.xpose.msra.mxu0 %v60
    %75 = vmatpush.xpose.msra.mxu0 %v57
    %76 = vmatpush.xpose.msra.mxu0 %v54
    %77 = vmatpush.xpose.msra.mxu0 %v51
    %78 = vmatpush.xpose.msra.mxu0 %v48
    %79 = vmatpush.xpose.msra.mxu0 %v45
    %80 = vmatpush.xpose.msra.mxu0 %v42
    %81 = vmatmul.f32.gmra.mxu0 %v36
    %v82 = vpop.f32.mrf.mxu0
    %v83 = vadd.f32 0.0, %v82
    %84 = vmatmul.f32.gmra.mxu0 %v39
    %v85 = vpop.f32.mrf.mxu0
    %v86 = vadd.f32 0.0, %v85
    %87 = vdwg.mxu0
    %v88 = vadd.f32 %v22, %v83
    %v89 = vadd.f32 %v23, %v86
    %vm90 = vcmask 523264
    %91 = vst.msk [vmem:[#allocation2] sm:$0xff] %vm90, %v88
    %92 = vst.msk [vmem:[#allocation2 + $0x8] sm:$0xff] %vm90, %v89
    // Predicated region
    $region18: #{tpu_custom_call.1} parent=1 // pred_check
      %p93 = pneg %p15
    $region19: #{tpu_custom_call.1} parent=1 // pred_check_branch
      %95 = sbr.rel (%p93) target = $region21
    $region20: #{tpu_custom_call.1} parent=1 // pred_region
      %v96 = vld [vmem:[%s2] sm:$0x1]
      %v97 = vld [vmem:[%s2 + $0x1] sm:$0x1]
      %v98 = vld [vmem:[#allocation2] sm:$0xff]
      %v99 = vld [vmem:[#allocation2 + $0x8] sm:$0xff]
      %v100 = vperm.slane %v96, 0
      %v101 = vmul.f32 %v98, %v100
      %v102 = vmul.f32 %v99, %v100
      %v103 = vperm.slane %v97, 0
      %v104 = vadd.f32 %v101, %v103
      %v105 = vadd.f32 %v102, %v103
      %106 = vst.msk [vmem:[#allocation3] sm:$0xff] %vm90, %v104
      %107 = vst.msk [vmem:[#allocation3 + $0x8] sm:$0xff] %vm90, %v105
    $region21: #{tpu_custom_call.1} parent=1 // pred_fallthru
      _
    // Predicated region
    $region22: #{tpu_custom_call.1} parent=1 // pred_check
      _
    $region23: #{tpu_custom_call.1} parent=1 // pred_check_branch
      %109 = sbr.rel (0) target = $region25
    $region24: #{tpu_custom_call.1} parent=1 // pred_region
      %111 = vsyncadd [#allocation4], 0
      %s112 = sshll.u32 [#allocation3], 4
      %s113 = int_to_ptr.vmem [resolvable:$true] %s112
      %s114 = sshll.u32 %s3, 4
      %s115 = int_to_ptr.hbm [resolvable:$true] %s114
      %120 = dma.vmem_to_hbm [thread:$0]  %s113, 256, %s115, [#allocation4], 128, 128, 8
    $region25: #{tpu_custom_call.1} parent=1 // pred_fallthru
      _
    // Predicated region
    $region26: #{tpu_custom_call.1} parent=1 // pred_check
      _
    $region27: #{tpu_custom_call.1} parent=1 // pred_check_branch
      %122 = sbr.rel (0) target = $region29
    $region28: #{tpu_custom_call.1} parent=1 // pred_region
      %124 = dma.done [#allocation4], 256
    $region29: #{tpu_custom_call.1} parent=1 // pred_fallthru
      _
    %125 = vsyncpa [#allocation4], 1

</llo_original>
